<compile_context>
chip_gen: v6e
topology: v6e:2x2x1
jax: 0.10.0
libtpu: 0.0.40
codegen_flags: <defaults>
</compile_context>

<pallas_src>
import jax
import jax.numpy as jnp
from jax.experimental import pallas as pl
from jax.experimental.pallas import tpu as pltpu

EPS = 1e-5


def _round_up(a, b):
    return (a + b - 1) // b * b


def prenorm_kernel(x_ref, g_ref, b_ref, w_ref, wb_ref, o_ref):
    # x_ref: (tm, D) tile of the flattened (batch*seq, D) input.
    x = x_ref[...].astype(jnp.float32)
    inv_d = jnp.float32(1.0 / x.shape[-1])

    # Single-pass LayerNorm statistics (biased variance, like torch.nn.LayerNorm).
    s = jnp.sum(x, axis=-1, keepdims=True)
    s2 = jnp.sum(x * x, axis=-1, keepdims=True)
    mean = s * inv_d
    var = jnp.maximum(s2 * inv_d - mean * mean, 0.0)
    xn = (x - mean) * jax.lax.rsqrt(var + EPS)

    # Affine in f32 regardless of parameter dtype (matches torch numerics).
    y = xn * g_ref[...].astype(jnp.float32) + b_ref[...].astype(jnp.float32)

    # fn := Linear(D, D), fused on the MXU. Feed the MXU in the weight dtype
    # (bf16 weights -> full-rate bf16 matmul) while accumulating in f32.
    y = y.astype(w_ref.dtype)
    out = jnp.dot(y, w_ref[...], preferred_element_type=jnp.float32)
    out = out + wb_ref[...].astype(jnp.float32)
    o_ref[...] = out.astype(o_ref.dtype)


def _prenorm_call(x2d, g2, b2, w, wb2, *, tm_eff, single_buffer_consts):
    M_pad, D = x2d.shape
    grid = (M_pad // tm_eff,)

    const_kwargs = dict(pipeline_mode=pl.Buffered(1)) if single_buffer_consts else {}

    in_specs = [
        pl.BlockSpec((tm_eff, D), lambda i: (i, 0)),                 # x rows
        pl.BlockSpec((1, D), lambda i: (0, 0), **const_kwargs),      # gamma
        pl.BlockSpec((1, D), lambda i: (0, 0), **const_kwargs),      # beta
        pl.BlockSpec((D, D), lambda i: (0, 0), **const_kwargs),      # fn weight
        pl.BlockSpec((1, D), lambda i: (0, 0), **const_kwargs),      # fn bias
    ]
    out_specs = pl.BlockSpec((tm_eff, D), lambda i: (i, 0))

    # VMEM budget: double-buffered x/out tiles + weight/param buffers + slack.
    n_const_bufs = 1 if single_buffer_consts else 2
    vmem_est = (2 * tm_eff * D * x2d.dtype.itemsize      # x (double-buffered)
                + 2 * tm_eff * D * x2d.dtype.itemsize    # out (double-buffered)
                + n_const_bufs * D * D * w.dtype.itemsize
                + n_const_bufs * 3 * max(D, 128) * 4
                + (4 << 20))
    vmem_limit = int(max(vmem_est, 32 << 20))

    cost = pl.CostEstimate(
        flops=2 * M_pad * D * D + 10 * M_pad * D,
        transcendentals=M_pad,
        bytes_accessed=(2 * M_pad * D * x2d.dtype.itemsize
                        + D * D * w.dtype.itemsize
                        + 3 * D * 4),
    )

    return pl.pallas_call(
        prenorm_kernel,
        out_shape=jax.ShapeDtypeStruct((M_pad, D), x2d.dtype),
        grid_spec=pltpu.PrefetchScalarGridSpec(
            num_scalar_prefetch=0,
            grid=grid,
            in_specs=in_specs,
            out_specs=out_specs,
        ),
        compiler_params=pltpu.CompilerParams(
            dimension_semantics=("parallel",),   # row axis shards across TCs on v7x
            vmem_limit_bytes=vmem_limit,
        ),
        cost_estimate=cost,
    )(x2d, g2, b2, w, wb2)


def prenorm(x, gamma, beta, w, wb, *, tm=256):
    """x: (B, S, D). Returns fn(LayerNorm(x)) with fn = y @ w + wb.

    tm is the row tile (sweep it): 256 is a good default on v6e/v7x, ~128 on
    v5e. It is clamped to the (8-aligned) row count so small inputs run with a
    single full block and no wasted padding.
    """
    B, S, D = x.shape
    M = B * S
    x2d = x.reshape(M, D)

    # Row tile: multiple of 8 (sublane), no larger than the padded row count.
    tm_eff = min(int(tm), _round_up(M, 8))
    tm_eff = max(8, _round_up(tm_eff, 8))
    M_pad = _round_up(M, tm_eff)
    if M_pad != M:
        x2d = jnp.pad(x2d, ((0, M_pad - M), (0, 0)))

    # 2-D params so the kernel sees lane-aligned (1, D) / (D, D) refs.
    g2 = gamma.reshape(1, D)
    b2 = beta.reshape(1, D)
    wb2 = wb.reshape(1, D)

    try:
        out2d = _prenorm_call(x2d, g2, b2, w, wb2,
                              tm_eff=tm_eff, single_buffer_consts=True)
    except Exception:
        # Fallback for jax builds where pipeline_mode=pl.Buffered(1) is not
        # accepted on pallas_call BlockSpecs: use default double-buffering.
        out2d = _prenorm_call(x2d, g2, b2, w, wb2,
                              tm_eff=tm_eff, single_buffer_consts=False)

    if M_pad != M:
        out2d = out2d[:M]
    return out2d.reshape(B, S, D)


def prenorm_ref(x, gamma, beta, w, wb):
    xf = x.astype(jnp.float32)
    mean = jnp.mean(xf, axis=-1, keepdims=True)
    var = jnp.mean((xf - mean) ** 2, axis=-1, keepdims=True)
    y = (xf - mean) * jax.lax.rsqrt(var + EPS) * gamma + beta
    return (y @ w + wb).astype(x.dtype)


if __name__ == "__main__":
    # Small but lane-dense demo config: D = 128 keeps output stores unmasked
    # and the MXU fed with full 128-wide tiles.
    B, S, D = 2, 8, 128
    key = jax.random.PRNGKey(0)
    kx, kw = jax.random.split(key)

    x = jax.random.normal(kx, (B, S, D), dtype=jnp.float32)

    # LayerNorm params: torch init (gamma=1, beta=0)
    gamma = jnp.ones((D,), jnp.float32)
    beta = jnp.zeros((D,), jnp.float32)

    # fn = Linear(D, D) with deterministic weights
    w = jax.random.normal(kw, (D, D), dtype=jnp.float32) * 0.02
    wb = jnp.zeros((D,), jnp.float32)

    out = prenorm(x, gamma, beta, w, wb)
    out = jax.block_until_ready(out)

    ref = prenorm_ref(x, gamma, beta, w, wb)
    assert out.shape == (B, S, D)
    assert jnp.allclose(out, ref, atol=1e-4, rtol=1e-4), "mismatch vs reference"
    print("KERNEL_OK")
</pallas_src>

<mosaic_0001>
module attributes {stable_mosaic.version = 11 : i64} {
  func.func @prenorm_kernel(%arg0: i32, %arg1: memref<16x128xf32, #tpu.memory_space<vmem>>, %arg2: memref<1x128xf32, #tpu.memory_space<vmem>>, %arg3: memref<1x128xf32, #tpu.memory_space<vmem>>, %arg4: memref<128x128xf32, #tpu.memory_space<vmem>>, %arg5: memref<1x128xf32, #tpu.memory_space<vmem>>, %arg6: memref<16x128xf32, #tpu.memory_space<vmem>>) attributes {dimension_semantics = [#tpu.dimension_semantics<parallel>], iteration_bounds = array<i64: 1>, scalar_prefetch = 0 : i64, scratch_operands = 0 : i64, tpu.core_type = #tpu.core_type<tc>, window_params = [{transform_indices = @transform_0, window_bounds = array<i64: 16, 128>}, {pipeline_mode = #tpu.pipeline_mode<synchronous>, transform_indices = @transform_1, window_bounds = array<i64: 1, 128>}, {pipeline_mode = #tpu.pipeline_mode<synchronous>, transform_indices = @transform_2, window_bounds = array<i64: 1, 128>}, {pipeline_mode = #tpu.pipeline_mode<synchronous>, transform_indices = @transform_3, window_bounds = array<i64: 128, 128>}, {pipeline_mode = #tpu.pipeline_mode<synchronous>, transform_indices = @transform_4, window_bounds = array<i64: 1, 128>}, {transform_indices = @transform_5, window_bounds = array<i64: 16, 128>}]} {
    %c0 = arith.constant 0 : index
    %c0_0 = arith.constant 0 : index
    %0 = vector.load %arg1[%c0, %c0_0] : memref<16x128xf32, #tpu.memory_space<vmem>>, vector<16x128xf32>
    %cst = arith.constant dense<0.000000e+00> : vector<16xf32>
    %1 = vector.multi_reduction <add>, %0, %cst [1] : vector<16x128xf32> to vector<16xf32>
    %2 = vector.shape_cast %1 : vector<16xf32> to vector<16x1xf32>
    %3 = arith.mulf %0, %0 : vector<16x128xf32>
    %cst_1 = arith.constant dense<0.000000e+00> : vector<16xf32>
    %4 = vector.multi_reduction <add>, %3, %cst_1 [1] : vector<16x128xf32> to vector<16xf32>
    %5 = vector.shape_cast %4 : vector<16xf32> to vector<16x1xf32>
    %cst_2 = arith.constant 7.812500e-03 : f32
    %6 = vector.broadcast %cst_2 : f32 to vector<16x1xf32>
    %7 = arith.mulf %2, %6 : vector<16x1xf32>
    %cst_3 = arith.constant 7.812500e-03 : f32
    %8 = vector.broadcast %cst_3 : f32 to vector<16x1xf32>
    %9 = arith.mulf %5, %8 : vector<16x1xf32>
    %10 = arith.mulf %7, %7 : vector<16x1xf32>
    %11 = arith.subf %9, %10 : vector<16x1xf32>
    %cst_4 = arith.constant 0.000000e+00 : f32
    %12 = vector.broadcast %cst_4 : f32 to vector<16x1xf32>
    %13 = arith.maximumf %11, %12 : vector<16x1xf32>
    %14 = vector.broadcast %7 : vector<16x1xf32> to vector<16x128xf32>
    %15 = arith.subf %0, %14 : vector<16x128xf32>
    %cst_5 = arith.constant 9.99999974E-6 : f32
    %16 = vector.broadcast %cst_5 : f32 to vector<16x1xf32>
    %17 = arith.addf %13, %16 : vector<16x1xf32>
    %18 = math.rsqrt %17 : vector<16x1xf32>
    %19 = vector.broadcast %18 : vector<16x1xf32> to vector<16x128xf32>
    %20 = arith.mulf %15, %19 : vector<16x128xf32>
    %c0_6 = arith.constant 0 : index
    %c0_7 = arith.constant 0 : index
    %21 = vector.load %arg2[%c0_6, %c0_7] : memref<1x128xf32, #tpu.memory_space<vmem>>, vector<1x128xf32>
    %22 = vector.broadcast %21 : vector<1x128xf32> to vector<16x128xf32>
    %23 = arith.mulf %20, %22 : vector<16x128xf32>
    %c0_8 = arith.constant 0 : index
    %c0_9 = arith.constant 0 : index
    %24 = vector.load %arg3[%c0_8, %c0_9] : memref<1x128xf32, #tpu.memory_space<vmem>>, vector<1x128xf32>
    %25 = vector.broadcast %24 : vector<1x128xf32> to vector<16x128xf32>
    %26 = arith.addf %23, %25 : vector<16x128xf32>
    %c0_10 = arith.constant 0 : index
    %c0_11 = arith.constant 0 : index
    %27 = vector.load %arg4[%c0_10, %c0_11] : memref<128x128xf32, #tpu.memory_space<vmem>>, vector<128x128xf32>
    %cst_12 = arith.constant dense<0.000000e+00> : vector<16x128xf32>
    %28 = tpu.matmul %26, %27, %cst_12 {dimension_numbers = #tpu.dot_dimension_numbers<[1], [0], [0], [1], [0, 0, 1, 1], [], []>} : vector<16x128xf32>, vector<128x128xf32>, vector<16x128xf32> -> vector<16x128xf32>
    %c0_13 = arith.constant 0 : index
    %c0_14 = arith.constant 0 : index
    %29 = vector.load %arg5[%c0_13, %c0_14] : memref<1x128xf32, #tpu.memory_space<vmem>>, vector<1x128xf32>
    %30 = vector.broadcast %29 : vector<1x128xf32> to vector<16x128xf32>
    %31 = arith.addf %28, %30 : vector<16x128xf32>
    %c0_15 = arith.constant 0 : index
    %c0_16 = arith.constant 0 : index
    %32 = vector.load %arg6[%c0_15, %c0_16] : memref<16x128xf32, #tpu.memory_space<vmem>>, vector<16x128xf32>
    tpu.vector_store %arg6[%c0_15, %c0_16], %31 {strides = array<i32>} : memref<16x128xf32, #tpu.memory_space<vmem>>, vector<16x128xf32>,
    return
  }
  func.func @transform_0(%arg0: i32) -> (i32, i32) {
    %c0_i32 = arith.constant 0 : i32
    %c0_i32_0 = arith.constant 0 : i32
    return %arg0, %c0_i32 : i32, i32
  }
  func.func @transform_1(%arg0: i32) -> (i32, i32) {
    %c0_i32 = arith.constant 0 : i32
    %c0_i32_0 = arith.constant 0 : i32
    %c0_i32_1 = arith.constant 0 : i32
    return %c0_i32, %c0_i32_0 : i32, i32
  }
  func.func @transform_2(%arg0: i32) -> (i32, i32) {
    %c0_i32 = arith.constant 0 : i32
    %c0_i32_0 = arith.constant 0 : i32
    %c0_i32_1 = arith.constant 0 : i32
    return %c0_i32, %c0_i32_0 : i32, i32
  }
  func.func @transform_3(%arg0: i32) -> (i32, i32) {
    %c0_i32 = arith.constant 0 : i32
    %c0_i32_0 = arith.constant 0 : i32
    %c0_i32_1 = arith.constant 0 : i32
    return %c0_i32, %c0_i32_0 : i32, i32
  }
  func.func @transform_4(%arg0: i32) -> (i32, i32) {
    %c0_i32 = arith.constant 0 : i32
    %c0_i32_0 = arith.constant 0 : i32
    %c0_i32_1 = arith.constant 0 : i32
    return %c0_i32, %c0_i32_0 : i32, i32
  }
  func.func @transform_5(%arg0: i32) -> (i32, i32) {
    %c0_i32 = arith.constant 0 : i32
    %c0_i32_0 = arith.constant 0 : i32
    return %arg0, %c0_i32 : i32, i32
  }
}

module attributes {stable_mosaic.version = 11 : i64} {
  func.func @prenorm_kernel(%arg0: i32, %arg1: memref<16x128xf32, #tpu.memory_space<vmem>>, %arg2: memref<1x128xf32, #tpu.memory_space<vmem>>, %arg3: memref<1x128xf32, #tpu.memory_space<vmem>>, %arg4: memref<128x128xf32, #tpu.memory_space<vmem>>, %arg5: memref<1x128xf32, #tpu.memory_space<vmem>>, %arg6: memref<16x128xf32, #tpu.memory_space<vmem>>) attributes {dimension_semantics = [#tpu.dimension_semantics<parallel>], iteration_bounds = array<i64: 1>, scalar_prefetch = 0 : i64, scratch_operands = 0 : i64, tpu.core_type = #tpu.core_type<tc>, window_params = [{transform_indices = @transform_0, window_bounds = array<i64: 16, 128>}, {pipeline_mode = #tpu.pipeline_mode<synchronous>, transform_indices = @transform_1, window_bounds = array<i64: 1, 128>}, {pipeline_mode = #tpu.pipeline_mode<synchronous>, transform_indices = @transform_2, window_bounds = array<i64: 1, 128>}, {pipeline_mode = #tpu.pipeline_mode<synchronous>, transform_indices = @transform_3, window_bounds = array<i64: 128, 128>}, {pipeline_mode = #tpu.pipeline_mode<synchronous>, transform_indices = @transform_4, window_bounds = array<i64: 1, 128>}, {transform_indices = @transform_5, window_bounds = array<i64: 16, 128>}]} {
    %c0 = arith.constant 0 : index
    %c0_0 = arith.constant 0 : index
    %0 = vector.load %arg1[%c0, %c0_0] : memref<16x128xf32, #tpu.memory_space<vmem>>, vector<16x128xf32>
    %cst = arith.constant dense<0.000000e+00> : vector<16xf32>
    %1 = vector.multi_reduction <add>, %0, %cst [1] : vector<16x128xf32> to vector<16xf32>
    %2 = vector.shape_cast %1 : vector<16xf32> to vector<16x1xf32>
    %3 = arith.mulf %0, %0 : vector<16x128xf32>
    %cst_1 = arith.constant dense<0.000000e+00> : vector<16xf32>
    %4 = vector.multi_reduction <add>, %3, %cst_1 [1] : vector<16x128xf32> to vector<16xf32>
    %5 = vector.shape_cast %4 : vector<16xf32> to vector<16x1xf32>
    %cst_2 = arith.constant 7.812500e-03 : f32
    %6 = vector.broadcast %cst_2 : f32 to vector<16x1xf32>
    %7 = arith.mulf %2, %6 : vector<16x1xf32>
    %cst_3 = arith.constant 7.812500e-03 : f32
    %8 = vector.broadcast %cst_3 : f32 to vector<16x1xf32>
    %9 = arith.mulf %5, %8 : vector<16x1xf32>
    %10 = arith.mulf %7, %7 : vector<16x1xf32>
    %11 = arith.subf %9, %10 : vector<16x1xf32>
    %cst_4 = arith.constant 0.000000e+00 : f32
    %12 = vector.broadcast %cst_4 : f32 to vector<16x1xf32>
    %13 = arith.maximumf %11, %12 : vector<16x1xf32>
    %14 = vector.broadcast %7 : vector<16x1xf32> to vector<16x128xf32>
    %15 = arith.subf %0, %14 : vector<16x128xf32>
    %cst_5 = arith.constant 9.99999974E-6 : f32
    %16 = vector.broadcast %cst_5 : f32 to vector<16x1xf32>
    %17 = arith.addf %13, %16 : vector<16x1xf32>
    %18 = math.rsqrt %17 : vector<16x1xf32>
    %19 = vector.broadcast %18 : vector<16x1xf32> to vector<16x128xf32>
    %20 = arith.mulf %15, %19 : vector<16x128xf32>
    %c0_6 = arith.constant 0 : index
    %c0_7 = arith.constant 0 : index
    %21 = vector.load %arg2[%c0_6, %c0_7] : memref<1x128xf32, #tpu.memory_space<vmem>>, vector<1x128xf32>
    %22 = vector.broadcast %21 : vector<1x128xf32> to vector<16x128xf32>
    %23 = arith.mulf %20, %22 : vector<16x128xf32>
    %c0_8 = arith.constant 0 : index
    %c0_9 = arith.constant 0 : index
    %24 = vector.load %arg3[%c0_8, %c0_9] : memref<1x128xf32, #tpu.memory_space<vmem>>, vector<1x128xf32>
    %25 = vector.broadcast %24 : vector<1x128xf32> to vector<16x128xf32>
    %26 = arith.addf %23, %25 : vector<16x128xf32>
    %c0_10 = arith.constant 0 : index
    %c0_11 = arith.constant 0 : index
    %27 = vector.load %arg4[%c0_10, %c0_11] : memref<128x128xf32, #tpu.memory_space<vmem>>, vector<128x128xf32>
    %cst_12 = arith.constant dense<0.000000e+00> : vector<16x128xf32>
    %28 = tpu.matmul %26, %27, %cst_12 {dimension_numbers = #tpu.dot_dimension_numbers<[1], [0], [0], [1], [0, 0, 1, 1], [], []>} : vector<16x128xf32>, vector<128x128xf32>, vector<16x128xf32> -> vector<16x128xf32>
    %c0_13 = arith.constant 0 : index
    %c0_14 = arith.constant 0 : index
    %29 = vector.load %arg5[%c0_13, %c0_14] : memref<1x128xf32, #tpu.memory_space<vmem>>, vector<1x128xf32>
    %30 = vector.broadcast %29 : vector<1x128xf32> to vector<16x128xf32>
    %31 = arith.addf %28, %30 : vector<16x128xf32>
    %c0_15 = arith.constant 0 : index
    %c0_16 = arith.constant 0 : index
    %32 = vector.load %arg6[%c0_15, %c0_16] : memref<16x128xf32, #tpu.memory_space<vmem>>, vector<16x128xf32>
    tpu.vector_store %arg6[%c0_15, %c0_16], %31 {strides = array<i32>} : memref<16x128xf32, #tpu.memory_space<vmem>>, vector<16x128xf32>,
    return
  }
  func.func @transform_0(%arg0: i32) -> (i32, i32) {
    %c0_i32 = arith.constant 0 : i32
    %c0_i32_0 = arith.constant 0 : i32
    return %arg0, %c0_i32 : i32, i32
  }
  func.func @transform_1(%arg0: i32) -> (i32, i32) {
    %c0_i32 = arith.constant 0 : i32
    %c0_i32_0 = arith.constant 0 : i32
    %c0_i32_1 = arith.constant 0 : i32
    return %c0_i32, %c0_i32_0 : i32, i32
  }
  func.func @transform_2(%arg0: i32) -> (i32, i32) {
    %c0_i32 = arith.constant 0 : i32
    %c0_i32_0 = arith.constant 0 : i32
    %c0_i32_1 = arith.constant 0 : i32
    return %c0_i32, %c0_i32_0 : i32, i32
  }
  func.func @transform_3(%arg0: i32) -> (i32, i32) {
    %c0_i32 = arith.constant 0 : i32
    %c0_i32_0 = arith.constant 0 : i32
    %c0_i32_1 = arith.constant 0 : i32
    return %c0_i32, %c0_i32_0 : i32, i32
  }
  func.func @transform_4(%arg0: i32) -> (i32, i32) {
    %c0_i32 = arith.constant 0 : i32
    %c0_i32_0 = arith.constant 0 : i32
    %c0_i32_1 = arith.constant 0 : i32
    return %c0_i32, %c0_i32_0 : i32, i32
  }
  func.func @transform_5(%arg0: i32) -> (i32, i32) {
    %c0_i32 = arith.constant 0 : i32
    %c0_i32_0 = arith.constant 0 : i32
    return %arg0, %c0_i32 : i32, i32
  }
}

</mosaic_0001>

<llo_original>
// kernel: tpu_custom_call.1
$region0: #{tpu_custom_call.1}
  #allocation0 [shape = 'u32[]', space=smem, size = 0x4, offset = 0x4, fixed_abs, tag = 'smem constant byte address 0x4 - core index']
  #allocation1 [shape = 'u32[144,128]{1,0:T(1,128)}', space=vmem, size = 0x12000, scoped, tag = 'internal scratch']
  %s0 = inlined_call_operand.hbm [shape: f32[16,128], index: 0, kind: input, shape index: {}]
  %s1 = inlined_call_operand.vmem [shape: f32[1,128], index: 1, kind: input, shape index: {}]
  %s2 = inlined_call_operand.vmem [shape: f32[1,128], index: 2, kind: input, shape index: {}]
  %s3 = inlined_call_operand.hbm [shape: f32[128,128], index: 3, kind: input, shape index: {}]
  %s4 = inlined_call_operand.vmem [shape: f32[1,128], index: 4, kind: input, shape index: {}]
  %s5 = inlined_call_operand.hbm [shape: f32[16,128], index: 5, kind: output, shape index: {}]
  %s6 = sld [smem:[#allocation0]]
  $region38: #{tpu_custom_call.1} parent=0
    _
  %s8 = ssub.s32 1, %s6
  %s9 = scalar_select 0, %s8, %s6
  $region1: #{tpu_custom_call.1} parent=0
    #allocation2 [shape = 'u8[8192]{0}', space=vmem, size = 0x2000, scoped, tag = 'input window, operand 0, single buffered']
    #allocation3 [shape = 's32[1]{0}', space=sflag, size = 0x4, scoped, tag = 'scoped memory for tpu_custom_call.1']
    #allocation4 [shape = 's32[1]{0}', space=sflag, size = 0x4, scoped, tag = 'scoped memory for tpu_custom_call.1']
    #allocation5 [shape = 'u8[65536]{0}', space=vmem, size = 0x10000, scoped, tag = 'input window, operand 3, single buffered']
    #allocation6 [shape = 's32[1]{0}', space=sflag, size = 0x4, scoped, tag = 'scoped memory for tpu_custom_call.1']
    #allocation7 [shape = 'u8[8192]{0}', space=vmem, size = 0x2000, scoped, tag = 'output window, operand 0, single buffered']
    %10 = vsyncpa [#allocation3], 0
    %11 = vsyncpa [#allocation6], 0
    %12 = vsyncpa [#allocation4], 0
    // Predicated region
    $region2: #{tpu_custom_call.1} parent=1 // pred_check
      _
    $region3: #{tpu_custom_call.1} parent=1 // pred_check_branch
      %14 = sbr.rel (0) target = $region5
    $region4: #{tpu_custom_call.1} parent=1 // pred_region
      %s16 = ssub.s32 256, 256
      %17 = vsyncadd [#allocation3], %s16
      %s18 = sshll.u32 [#allocation2], 4
      %s19 = int_to_ptr.vmem [resolvable:$true] %s18
      %24 = dma.hbm_to_vmem [thread:$0]  %s0, 256, %s19, [#allocation3], 128, 128, 8
    $region5: #{tpu_custom_call.1} parent=1 // pred_fallthru
      _
    // Predicated region
    $region6: #{tpu_custom_call.1} parent=1 // pred_check
      _
    $region7: #{tpu_custom_call.1} parent=1 // pred_check_branch
      %26 = sbr.rel (0) target = $region9
    $region8: #{tpu_custom_call.1} parent=1 // pred_region
      _
    $region9: #{tpu_custom_call.1} parent=1 // pred_fallthru
      _
    // Predicated region
    $region10: #{tpu_custom_call.1} parent=1 // pred_check
      _
    $region11: #{tpu_custom_call.1} parent=1 // pred_check_branch
      %28 = sbr.rel (0) target = $region13
    $region12: #{tpu_custom_call.1} parent=1 // pred_region
      _
    $region13: #{tpu_custom_call.1} parent=1 // pred_fallthru
      _
    // Predicated region
    $region14: #{tpu_custom_call.1} parent=1 // pred_check
      _
    $region15: #{tpu_custom_call.1} parent=1 // pred_check_branch
      %30 = sbr.rel (0) target = $region17
    $region16: #{tpu_custom_call.1} parent=1 // pred_region
      %s32 = ssub.s32 2048, 2048
      %33 = vsyncadd [#allocation6], %s32
      %s34 = sshll.u32 [#allocation5], 4
      %s35 = int_to_ptr.vmem [resolvable:$true] %s34
      %40 = dma.hbm_to_vmem [thread:$0]  %s3, 2048, %s35, [#allocation6], 128, 128, 8
    $region17: #{tpu_custom_call.1} parent=1 // pred_fallthru
      _
    // Predicated region
    $region18: #{tpu_custom_call.1} parent=1 // pred_check
      _
    $region19: #{tpu_custom_call.1} parent=1 // pred_check_branch
      %42 = sbr.rel (0) target = $region21
    $region20: #{tpu_custom_call.1} parent=1 // pred_region
      _
    $region21: #{tpu_custom_call.1} parent=1 // pred_fallthru
      _
    // Predicated region
    $region22: #{tpu_custom_call.1} parent=1 // pred_check
      _
    $region23: #{tpu_custom_call.1} parent=1 // pred_check_branch
      %44 = sbr.rel (0) target = $region25
    $region24: #{tpu_custom_call.1} parent=1 // pred_region
      %45 = dma.done [#allocation3], 256
    $region25: #{tpu_custom_call.1} parent=1 // pred_fallthru
      _
    // Predicated region
    $region26: #{tpu_custom_call.1} parent=1 // pred_check
      _
    $region27: #{tpu_custom_call.1} parent=1 // pred_check_branch
      %47 = sbr.rel (0) target = $region29
    $region28: #{tpu_custom_call.1} parent=1 // pred_region
      %48 = dma.done [#allocation6], 2048
    $region29: #{tpu_custom_call.1} parent=1 // pred_fallthru
      _
    %v49 = vld [vmem:[#allocation2] sm:$0xff]
    %v50 = vld [vmem:[#allocation2 + $0x8] sm:$0xff]
    %51 = vadd.xlane.f32.xlu0 %v49
    %v52 = vpop.xlane.xlu0 %51
    %53 = vadd.xlane.f32.xlu0 %v50
    %v54 = vpop.xlane.xlu0 %53
    %v55 = vmul.f32 %v49, %v49
    %v56 = vmul.f32 %v50, %v50
    %57 = vadd.xlane.f32.xlu0 %v55
    %v58 = vpop.xlane.xlu0 %57
    %59 = vadd.xlane.f32.xlu0 %v56
    %v60 = vpop.xlane.xlu0 %59
    %v61 = vmul.f32 %v52, 0.0078125
    %v62 = vmul.f32 %v54, 0.0078125
    %v63 = vmul.f32 %v58, 0.0078125
    %v64 = vmul.f32 %v60, 0.0078125
    %v65 = vmul.f32 %v61, %v61
    %v66 = vmul.f32 %v62, %v62
    %v67 = vsub.f32 %v63, %v65
    %v68 = vsub.f32 %v64, %v66
    %v69 = vmax.f32 %v67, 0.0
    %v70 = vmax.f32 %v68, 0.0
    %v71 = vsub.f32 %v49, %v61
    %v72 = vsub.f32 %v50, %v62
    %v73 = vadd.f32 %v69, 1e-05
    %v74 = vadd.f32 %v70, 1e-05
    %v75 = vrsqrt.pop %v73
    %v76 = vrsqrt.pop %v74
    %v77 = vmul.f32 %v71, %v75
    %v78 = vmul.f32 %v72, %v76
    %v79 = vld [vmem:[%s1] sm:$0x1]
    %v81 = vlaneseq
    %v82 = vshrl.u32 %v81, 7
    %v83 = vsub.s32 0, %v82
    %v84 = vrot.slane %v79, %v83
    %v86 = vmul.f32 %v77, %v84
    %v87 = vmul.f32 %v78, %v84
    %v88 = vld [vmem:[%s2] sm:$0x1]
    %v90 = vlaneseq
    %v91 = vshrl.u32 %v90, 7
    %v92 = vsub.s32 0, %v91
    %v93 = vrot.slane %v88, %v92
    %v95 = vadd.f32 %v86, %v93
    %v96 = vadd.f32 %v87, %v93
    %v97 = vld [vmem:[#allocation5] sm:$0xff]
    %v98 = vld [vmem:[#allocation5 + $0x8] sm:$0xff]
    %v99 = vld [vmem:[#allocation5 + $0x10] sm:$0xff]
    %v100 = vld [vmem:[#allocation5 + $0x18] sm:$0xff]
    %v101 = vld [vmem:[#allocation5 + $0x20] sm:$0xff]
    %v102 = vld [vmem:[#allocation5 + $0x28] sm:$0xff]
    %v103 = vld [vmem:[#allocation5 + $0x30] sm:$0xff]
    %v104 = vld [vmem:[#allocation5 + $0x38] sm:$0xff]
    %v105 = vld [vmem:[#allocation5 + $0x40] sm:$0xff]
    %v106 = vld [vmem:[#allocation5 + $0x48] sm:$0xff]
    %v107 = vld [vmem:[#allocation5 + $0x50] sm:$0xff]
    %v108 = vld [vmem:[#allocation5 + $0x58] sm:$0xff]
    %v109 = vld [vmem:[#allocation5 + $0x60] sm:$0xff]
    %v110 = vld [vmem:[#allocation5 + $0x68] sm:$0xff]
    %v111 = vld [vmem:[#allocation5 + $0x70] sm:$0xff]
    %v112 = vld [vmem:[#allocation5 + $0x78] sm:$0xff]
    %v113 = vld [vmem:[%s4] sm:$0x1]
    %v115 = vlaneseq
    %v116 = vshrl.u32 %v115, 7
    %v117 = vsub.s32 0, %v116
    %v118 = vrot.slane %v113, %v117
    %120 = vmatprep.subr.mxu0 0.0
    %121 = vmatpush1.msra.mxu0 %v112
    %122 = vmatprep.subr.mxu0 0.0
    %123 = vmatpush1.msra.mxu0 %v111
    %124 = vmatprep.subr.mxu0 0.0
    %125 = vmatpush1.msra.mxu0 %v110
    %126 = vmatprep.subr.mxu0 0.0
    %127 = vmatpush1.msra.mxu0 %v109
    %128 = vmatprep.subr.mxu0 0.0
    %129 = vmatpush1.msra.mxu0 %v108
    %130 = vmatprep.subr.mxu0 0.0
    %131 = vmatpush1.msra.mxu0 %v107
    %132 = vmatprep.subr.mxu0 0.0
    %133 = vmatpush1.msra.mxu0 %v106
    %134 = vmatprep.subr.mxu0 0.0
    %135 = vmatpush1.msra.mxu0 %v105
    %136 = vmatprep.subr.mxu0 0.0
    %137 = vmatpush1.msra.mxu0 %v104
    %138 = vmatprep.subr.mxu0 0.0
    %139 = vmatpush1.msra.mxu0 %v103
    %140 = vmatprep.subr.mxu0 0.0
    %141 = vmatpush1.msra.mxu0 %v102
    %142 = vmatprep.subr.mxu0 0.0
    %143 = vmatpush1.msra.mxu0 %v101
    %144 = vmatprep.subr.mxu0 0.0
    %145 = vmatpush1.msra.mxu0 %v100
    %146 = vmatprep.subr.mxu0 0.0
    %147 = vmatpush1.msra.mxu0 %v99
    %148 = vmatprep.subr.mxu0 0.0
    %149 = vmatpush1.msra.mxu0 %v98
    %150 = vmatprep.subr.mxu0 0.0
    %151 = vmatpush1.msra.mxu0 %v97
    %152 = vmatprep.subr.mxu0 0.0
    %153 = vmatpush2.msra.mxu0 0.0
    %154 = vmatprep.subr.mxu0 0.0
    %155 = vmatpush2.msra.mxu0 0.0
    %156 = vmatprep.subr.mxu0 0.0
    %157 = vmatpush2.msra.mxu0 0.0
    %158 = vmatprep.subr.mxu0 0.0
    %159 = vmatpush2.msra.mxu0 0.0
    %160 = vmatprep.subr.mxu0 0.0
    %161 = vmatpush2.msra.mxu0 0.0
    %162 = vmatprep.subr.mxu0 0.0
    %163 = vmatpush2.msra.mxu0 0.0
    %164 = vmatprep.subr.mxu0 0.0
    %165 = vmatpush2.msra.mxu0 0.0
    %166 = vmatprep.subr.mxu0 0.0
    %167 = vmatpush2.msra.mxu0 0.0
    %168 = vmatprep.subr.mxu0 0.0
    %169 = vmatpush2.msra.mxu0 0.0
    %170 = vmatprep.subr.mxu0 0.0
    %171 = vmatpush2.msra.mxu0 0.0
    %172 = vmatprep.subr.mxu0 0.0
    %173 = vmatpush2.msra.mxu0 0.0
    %174 = vmatprep.subr.mxu0 0.0
    %175 = vmatpush2.msra.mxu0 0.0
    %176 = vmatprep.subr.mxu0 0.0
    %177 = vmatpush2.msra.mxu0 0.0
    %178 = vmatprep.subr.mxu0 0.0
    %179 = vmatpush2.msra.mxu0 0.0
    %180 = vmatprep.subr.mxu0 0.0
    %181 = vmatpush2.msra.mxu0 0.0
    %182 = vmatprep.subr.mxu0 0.0
    %183 = vmatpush2.msra.mxu0 0.0
    %184 = vmatprep.mubr.f32.mxu0 0.0
    %185 = vmatmul.mubr.f32.gmra.mxu0 %v95
    %v186 = vpop.f32.mrf.mxu0
    %v187 = vadd.f32 %v118, %v186
    %v188 = vpop.f32.mrf.mxu0
    %189 = vmatprep.mubr.f32.mxu0 0.0
    %190 = vmatmul.mubr.f32.gmra.mxu0 %v96
    %v191 = vpop.f32.mrf.mxu0
    %v192 = vadd.f32 %v118, %v191
    %v193 = vpop.f32.mrf.mxu0
    %194 = vdwg.mxu0
    %195 = vst [vmem:[#allocation7] sm:$0xff] %v187
    %196 = vst [vmem:[#allocation7 + $0x8] sm:$0xff] %v192
    // Predicated region
    $region30: #{tpu_custom_call.1} parent=1 // pred_check
      _
    $region31: #{tpu_custom_call.1} parent=1 // pred_check_branch
      %198 = sbr.rel (0) target = $region33
    $region32: #{tpu_custom_call.1} parent=1 // pred_region
      %s200 = ssub.s32 256, 256
      %201 = vsyncadd [#allocation4], %s200
      %s202 = sshll.u32 [#allocation7], 4
      %s203 = int_to_ptr.vmem [resolvable:$true] %s202
      %208 = dma.vmem_to_hbm [thread:$0]  %s203, 256, %s5, [#allocation4], 128, 128, 8
    $region33: #{tpu_custom_call.1} parent=1 // pred_fallthru
      _
    // Predicated region
    $region34: #{tpu_custom_call.1} parent=1 // pred_check
      _
    $region35: #{tpu_custom_call.1} parent=1 // pred_check_branch
      %210 = sbr.rel (0) target = $region37
    $region36: #{tpu_custom_call.1} parent=1 // pred_region
      %211 = dma.done [#allocation4], 256
    $region37: #{tpu_custom_call.1} parent=1 // pred_fallthru
      _
    %212 = vsyncpa [#allocation3], 1
    %213 = vsyncpa [#allocation6], 1
    %214 = vsyncpa [#allocation4], 1

// kernel: tpu_custom_call.1
$region0: #{tpu_custom_call.1}
  #allocation0 [shape = 'u32[]', space=smem, size = 0x4, offset = 0x4, fixed_abs, tag = 'smem constant byte address 0x4 - core index']
  #allocation1 [shape = 'u32[144,128]{1,0:T(1,128)}', space=vmem, size = 0x12000, scoped, tag = 'internal scratch']
  %s0 = inlined_call_operand.hbm [shape: f32[16,128], index: 0, kind: input, shape index: {}]
  %s1 = inlined_call_operand.vmem [shape: f32[1,128], index: 1, kind: input, shape index: {}]
  %s2 = inlined_call_operand.vmem [shape: f32[1,128], index: 2, kind: input, shape index: {}]
  %s3 = inlined_call_operand.hbm [shape: f32[128,128], index: 3, kind: input, shape index: {}]
  %s4 = inlined_call_operand.vmem [shape: f32[1,128], index: 4, kind: input, shape index: {}]
  %s5 = inlined_call_operand.hbm [shape: f32[16,128], index: 5, kind: output, shape index: {}]
  %s6 = sld [smem:[#allocation0]]
  $region38: #{tpu_custom_call.1} parent=0
    _
  %s8 = ssub.s32 1, %s6
  %s9 = scalar_select 0, %s8, %s6
  $region1: #{tpu_custom_call.1} parent=0
    #allocation2 [shape = 'u8[8192]{0}', space=vmem, size = 0x2000, scoped, tag = 'input window, operand 0, single buffered']
    #allocation3 [shape = 's32[1]{0}', space=sflag, size = 0x4, scoped, tag = 'scoped memory for tpu_custom_call.1']
    #allocation4 [shape = 's32[1]{0}', space=sflag, size = 0x4, scoped, tag = 'scoped memory for tpu_custom_call.1']
    #allocation5 [shape = 'u8[65536]{0}', space=vmem, size = 0x10000, scoped, tag = 'input window, operand 3, single buffered']
    #allocation6 [shape = 's32[1]{0}', space=sflag, size = 0x4, scoped, tag = 'scoped memory for tpu_custom_call.1']
    #allocation7 [shape = 'u8[8192]{0}', space=vmem, size = 0x2000, scoped, tag = 'output window, operand 0, single buffered']
    %10 = vsyncpa [#allocation3], 0
    %11 = vsyncpa [#allocation6], 0
    %12 = vsyncpa [#allocation4], 0
    // Predicated region
    $region2: #{tpu_custom_call.1} parent=1 // pred_check
      _
    $region3: #{tpu_custom_call.1} parent=1 // pred_check_branch
      %14 = sbr.rel (0) target = $region5
    $region4: #{tpu_custom_call.1} parent=1 // pred_region
      %s16 = ssub.s32 256, 256
      %17 = vsyncadd [#allocation3], %s16
      %s18 = sshll.u32 [#allocation2], 4
      %s19 = int_to_ptr.vmem [resolvable:$true] %s18
      %24 = dma.hbm_to_vmem [thread:$0]  %s0, 256, %s19, [#allocation3], 128, 128, 8
    $region5: #{tpu_custom_call.1} parent=1 // pred_fallthru
      _
    // Predicated region
    $region6: #{tpu_custom_call.1} parent=1 // pred_check
      _
    $region7: #{tpu_custom_call.1} parent=1 // pred_check_branch
      %26 = sbr.rel (0) target = $region9
    $region8: #{tpu_custom_call.1} parent=1 // pred_region
      _
    $region9: #{tpu_custom_call.1} parent=1 // pred_fallthru
      _
    // Predicated region
    $region10: #{tpu_custom_call.1} parent=1 // pred_check
      _
    $region11: #{tpu_custom_call.1} parent=1 // pred_check_branch
      %28 = sbr.rel (0) target = $region13
    $region12: #{tpu_custom_call.1} parent=1 // pred_region
      _
    $region13: #{tpu_custom_call.1} parent=1 // pred_fallthru
      _
    // Predicated region
    $region14: #{tpu_custom_call.1} parent=1 // pred_check
      _
    $region15: #{tpu_custom_call.1} parent=1 // pred_check_branch
      %30 = sbr.rel (0) target = $region17
    $region16: #{tpu_custom_call.1} parent=1 // pred_region
      %s32 = ssub.s32 2048, 2048
      %33 = vsyncadd [#allocation6], %s32
      %s34 = sshll.u32 [#allocation5], 4
      %s35 = int_to_ptr.vmem [resolvable:$true] %s34
      %40 = dma.hbm_to_vmem [thread:$0]  %s3, 2048, %s35, [#allocation6], 128, 128, 8
    $region17: #{tpu_custom_call.1} parent=1 // pred_fallthru
      _
    // Predicated region
    $region18: #{tpu_custom_call.1} parent=1 // pred_check
      _
    $region19: #{tpu_custom_call.1} parent=1 // pred_check_branch
      %42 = sbr.rel (0) target = $region21
    $region20: #{tpu_custom_call.1} parent=1 // pred_region
      _
    $region21: #{tpu_custom_call.1} parent=1 // pred_fallthru
      _
    // Predicated region
    $region22: #{tpu_custom_call.1} parent=1 // pred_check
      _
    $region23: #{tpu_custom_call.1} parent=1 // pred_check_branch
      %44 = sbr.rel (0) target = $region25
    $region24: #{tpu_custom_call.1} parent=1 // pred_region
      %45 = dma.done [#allocation3], 256
    $region25: #{tpu_custom_call.1} parent=1 // pred_fallthru
      _
    // Predicated region
    $region26: #{tpu_custom_call.1} parent=1 // pred_check
      _
    $region27: #{tpu_custom_call.1} parent=1 // pred_check_branch
      %47 = sbr.rel (0) target = $region29
    $region28: #{tpu_custom_call.1} parent=1 // pred_region
      %48 = dma.done [#allocation6], 2048
    $region29: #{tpu_custom_call.1} parent=1 // pred_fallthru
      _
    %v49 = vld [vmem:[#allocation2] sm:$0xff]
    %v50 = vld [vmem:[#allocation2 + $0x8] sm:$0xff]
    %51 = vadd.xlane.f32.xlu0 %v49
    %v52 = vpop.xlane.xlu0 %51
    %53 = vadd.xlane.f32.xlu0 %v50
    %v54 = vpop.xlane.xlu0 %53
    %v55 = vmul.f32 %v49, %v49
    %v56 = vmul.f32 %v50, %v50
    %57 = vadd.xlane.f32.xlu0 %v55
    %v58 = vpop.xlane.xlu0 %57
    %59 = vadd.xlane.f32.xlu0 %v56
    %v60 = vpop.xlane.xlu0 %59
    %v61 = vmul.f32 %v52, 0.0078125
    %v62 = vmul.f32 %v54, 0.0078125
    %v63 = vmul.f32 %v58, 0.0078125
    %v64 = vmul.f32 %v60, 0.0078125
    %v65 = vmul.f32 %v61, %v61
    %v66 = vmul.f32 %v62, %v62
    %v67 = vsub.f32 %v63, %v65
    %v68 = vsub.f32 %v64, %v66
    %v69 = vmax.f32 %v67, 0.0
    %v70 = vmax.f32 %v68, 0.0
    %v71 = vsub.f32 %v49, %v61
    %v72 = vsub.f32 %v50, %v62
    %v73 = vadd.f32 %v69, 1e-05
    %v74 = vadd.f32 %v70, 1e-05
    %v75 = vrsqrt.pop %v73
    %v76 = vrsqrt.pop %v74
    %v77 = vmul.f32 %v71, %v75
    %v78 = vmul.f32 %v72, %v76
    %v79 = vld [vmem:[%s1] sm:$0x1]
    %v81 = vlaneseq
    %v82 = vshrl.u32 %v81, 7
    %v83 = vsub.s32 0, %v82
    %v84 = vrot.slane %v79, %v83
    %v86 = vmul.f32 %v77, %v84
    %v87 = vmul.f32 %v78, %v84
    %v88 = vld [vmem:[%s2] sm:$0x1]
    %v90 = vlaneseq
    %v91 = vshrl.u32 %v90, 7
    %v92 = vsub.s32 0, %v91
    %v93 = vrot.slane %v88, %v92
    %v95 = vadd.f32 %v86, %v93
    %v96 = vadd.f32 %v87, %v93
    %v97 = vld [vmem:[#allocation5] sm:$0xff]
    %v98 = vld [vmem:[#allocation5 + $0x8] sm:$0xff]
    %v99 = vld [vmem:[#allocation5 + $0x10] sm:$0xff]
    %v100 = vld [vmem:[#allocation5 + $0x18] sm:$0xff]
    %v101 = vld [vmem:[#allocation5 + $0x20] sm:$0xff]
    %v102 = vld [vmem:[#allocation5 + $0x28] sm:$0xff]
    %v103 = vld [vmem:[#allocation5 + $0x30] sm:$0xff]
    %v104 = vld [vmem:[#allocation5 + $0x38] sm:$0xff]
    %v105 = vld [vmem:[#allocation5 + $0x40] sm:$0xff]
    %v106 = vld [vmem:[#allocation5 + $0x48] sm:$0xff]
    %v107 = vld [vmem:[#allocation5 + $0x50] sm:$0xff]
    %v108 = vld [vmem:[#allocation5 + $0x58] sm:$0xff]
    %v109 = vld [vmem:[#allocation5 + $0x60] sm:$0xff]
    %v110 = vld [vmem:[#allocation5 + $0x68] sm:$0xff]
    %v111 = vld [vmem:[#allocation5 + $0x70] sm:$0xff]
    %v112 = vld [vmem:[#allocation5 + $0x78] sm:$0xff]
    %v113 = vld [vmem:[%s4] sm:$0x1]
    %v115 = vlaneseq
    %v116 = vshrl.u32 %v115, 7
    %v117 = vsub.s32 0, %v116
    %v118 = vrot.slane %v113, %v117
    %120 = vmatprep.subr.mxu0 0.0
    %121 = vmatpush1.msra.mxu0 %v112
    %122 = vmatprep.subr.mxu0 0.0
    %123 = vmatpush1.msra.mxu0 %v111
    %124 = vmatprep.subr.mxu0 0.0
    %125 = vmatpush1.msra.mxu0 %v110
    %126 = vmatprep.subr.mxu0 0.0
    %127 = vmatpush1.msra.mxu0 %v109
    %128 = vmatprep.subr.mxu0 0.0
    %129 = vmatpush1.msra.mxu0 %v108
    %130 = vmatprep.subr.mxu0 0.0
    %131 = vmatpush1.msra.mxu0 %v107
    %132 = vmatprep.subr.mxu0 0.0
    %133 = vmatpush1.msra.mxu0 %v106
    %134 = vmatprep.subr.mxu0 0.0
    %135 = vmatpush1.msra.mxu0 %v105
    %136 = vmatprep.subr.mxu0 0.0
    %137 = vmatpush1.msra.mxu0 %v104
    %138 = vmatprep.subr.mxu0 0.0
    %139 = vmatpush1.msra.mxu0 %v103
    %140 = vmatprep.subr.mxu0 0.0
    %141 = vmatpush1.msra.mxu0 %v102
    %142 = vmatprep.subr.mxu0 0.0
    %143 = vmatpush1.msra.mxu0 %v101
    %144 = vmatprep.subr.mxu0 0.0
    %145 = vmatpush1.msra.mxu0 %v100
    %146 = vmatprep.subr.mxu0 0.0
    %147 = vmatpush1.msra.mxu0 %v99
    %148 = vmatprep.subr.mxu0 0.0
    %149 = vmatpush1.msra.mxu0 %v98
    %150 = vmatprep.subr.mxu0 0.0
    %151 = vmatpush1.msra.mxu0 %v97
    %152 = vmatprep.subr.mxu0 0.0
    %153 = vmatpush2.msra.mxu0 0.0
    %154 = vmatprep.subr.mxu0 0.0
    %155 = vmatpush2.msra.mxu0 0.0
    %156 = vmatprep.subr.mxu0 0.0
    %157 = vmatpush2.msra.mxu0 0.0
    %158 = vmatprep.subr.mxu0 0.0
    %159 = vmatpush2.msra.mxu0 0.0
    %160 = vmatprep.subr.mxu0 0.0
    %161 = vmatpush2.msra.mxu0 0.0
    %162 = vmatprep.subr.mxu0 0.0
    %163 = vmatpush2.msra.mxu0 0.0
    %164 = vmatprep.subr.mxu0 0.0
    %165 = vmatpush2.msra.mxu0 0.0
    %166 = vmatprep.subr.mxu0 0.0
    %167 = vmatpush2.msra.mxu0 0.0
    %168 = vmatprep.subr.mxu0 0.0
    %169 = vmatpush2.msra.mxu0 0.0
    %170 = vmatprep.subr.mxu0 0.0
    %171 = vmatpush2.msra.mxu0 0.0
    %172 = vmatprep.subr.mxu0 0.0
    %173 = vmatpush2.msra.mxu0 0.0
    %174 = vmatprep.subr.mxu0 0.0
    %175 = vmatpush2.msra.mxu0 0.0
    %176 = vmatprep.subr.mxu0 0.0
    %177 = vmatpush2.msra.mxu0 0.0
    %178 = vmatprep.subr.mxu0 0.0
    %179 = vmatpush2.msra.mxu0 0.0
    %180 = vmatprep.subr.mxu0 0.0
    %181 = vmatpush2.msra.mxu0 0.0
    %182 = vmatprep.subr.mxu0 0.0
    %183 = vmatpush2.msra.mxu0 0.0
    %184 = vmatprep.mubr.f32.mxu0 0.0
    %185 = vmatmul.mubr.f32.gmra.mxu0 %v95
    %v186 = vpop.f32.mrf.mxu0
    %v187 = vadd.f32 %v118, %v186
    %v188 = vpop.f32.mrf.mxu0
    %189 = vmatprep.mubr.f32.mxu0 0.0
    %190 = vmatmul.mubr.f32.gmra.mxu0 %v96
    %v191 = vpop.f32.mrf.mxu0
    %v192 = vadd.f32 %v118, %v191
    %v193 = vpop.f32.mrf.mxu0
    %194 = vdwg.mxu0
    %195 = vst [vmem:[#allocation7] sm:$0xff] %v187
    %196 = vst [vmem:[#allocation7 + $0x8] sm:$0xff] %v192
    // Predicated region
    $region30: #{tpu_custom_call.1} parent=1 // pred_check
      _
    $region31: #{tpu_custom_call.1} parent=1 // pred_check_branch
      %198 = sbr.rel (0) target = $region33
    $region32: #{tpu_custom_call.1} parent=1 // pred_region
      %s200 = ssub.s32 256, 256
      %201 = vsyncadd [#allocation4], %s200
      %s202 = sshll.u32 [#allocation7], 4
      %s203 = int_to_ptr.vmem [resolvable:$true] %s202
      %208 = dma.vmem_to_hbm [thread:$0]  %s203, 256, %s5, [#allocation4], 128, 128, 8
    $region33: #{tpu_custom_call.1} parent=1 // pred_fallthru
      _
    // Predicated region
    $region34: #{tpu_custom_call.1} parent=1 // pred_check
      _
    $region35: #{tpu_custom_call.1} parent=1 // pred_check_branch
      %210 = sbr.rel (0) target = $region37
    $region36: #{tpu_custom_call.1} parent=1 // pred_region
      %211 = dma.done [#allocation4], 256
    $region37: #{tpu_custom_call.1} parent=1 // pred_fallthru
      _
    %212 = vsyncpa [#allocation3], 1
    %213 = vsyncpa [#allocation6], 1
    %214 = vsyncpa [#allocation4], 1

</llo_original>
